<compile_context>
chip_gen: v5e
topology: v5e:2x2
jax: 0.10.0
libtpu: 0.0.40
codegen_flags: <defaults>
</compile_context>

<pallas_src>
import math

import jax
import jax.numpy as jnp
from jax.experimental import pallas as pl
from jax.experimental.pallas import tpu as pltpu


def _make_onehot_kernel(P, mm_dtype):
    """Build the packed one-hot kernel for pack factor P.

    Output contract:  o[r, g*E + e] = (idx[r, g] == e)
    """
    if P == 1:
        def kernel(pos_ref, idx_ref, o_ref):
            # idx_ref: (tr, 1) narrow int; pos_ref: (1, L) f32 constant.
            per_lane = idx_ref[...].astype(jnp.float32)              # (tr, 1) -> lane-broadcast
            o_ref[...] = (pos_ref[...] == per_lane).astype(o_ref.dtype)
        return kernel

    def kernel(pos_ref, g_ref, idx_ref, o_ref):
        # Group-broadcast the P packed indices across their E-lane groups on the
        # (otherwise idle) MXU:  per_lane[r, l] = idx[r, l // E].
        # G[g, l] = 1 iff l // E == g, so exactly one term is non-zero -> exact.
        idx_f = idx_ref[...].astype(mm_dtype)                        # (tr, P)
        per_lane = jnp.dot(idx_f, g_ref[...],
                           preferred_element_type=jnp.float32)       # (tr, L)
        # 2 VALU ops per output vreg: compare + select-to-dtype.
        o_ref[...] = (pos_ref[...] == per_lane).astype(o_ref.dtype)
    return kernel


def one_hot_embedding(xs, weights, *, tile_rows=8192, out_dtype=None,
                      max_pack_lanes=2048):
    """Pallas equivalent of `OneHotEmbedding.forward`: returns weights[xs].

    Exploits the fact that `weights` is the frozen identity matrix; it is only
    consulted for num_embeddings (E) and the output dtype (overridable via
    `out_dtype` — 0/1 is exact in any dtype, bf16/int8 halve/quarter HBM traffic).
    """
    E = weights.shape[0]
    out_dtype = weights.dtype if out_dtype is None else jnp.dtype(out_dtype)
    orig_shape = xs.shape

    flat = xs.reshape(-1)
    n = flat.shape[0]

    # ---- lane-dense packing: L = lcm(E, 128) lanes per row, P = L // E ------
    L = E * (128 // math.gcd(E, 128))            # lcm(E, 128)
    if L <= max_pack_lanes:
        P = L // E
    else:
        # Fallback for awkward large E: masked (<128-lane) stores, still correct.
        P, L = 1, E

    # ---- narrow index dtype: the (tr, P) block lane-pads to 128 lanes anyway,
    # so int8 cuts its VMEM footprint 4x vs int32 and shrinks HBM index reads.
    if E <= 128:
        idx_dtype = jnp.int8
    elif E <= 32768:
        idx_dtype = jnp.int16
    else:
        idx_dtype = jnp.int32
    flat = flat.astype(idx_dtype)

    pad = (-n) % P                               # at most P-1 dummy indices
    if pad:
        flat = jnp.pad(flat, (0, pad))
    rows = (n + pad) // P
    idx2d = flat.reshape(rows, P)

    # Tile: as big as possible (amortize ~0.35us/step), clamped to the
    # sublane-rounded row count for small inputs.
    tr = min(int(tile_rows), max(8, ((rows + 7) // 8) * 8))
    grid = (pl.cdiv(rows, tr),)

    # bf16 MXU matmul is single-pass and exact for integer indices <= 256.
    mm_dtype = jnp.bfloat16 if E <= 256 else jnp.float32

    # Precomputed constants (constant index_map => DMA'd once, reused).
    pos_row = (jnp.arange(L, dtype=jnp.int32) % E).astype(jnp.float32).reshape(1, L)

    kernel = _make_onehot_kernel(P, mm_dtype)

    in_arrays = [pos_row]
    in_specs = [pl.BlockSpec((1, L), lambda i: (0, 0))]
    if P > 1:
        grp = jnp.arange(L, dtype=jnp.int32) // E
        G = (grp[None, :] == jnp.arange(P, dtype=jnp.int32)[:, None]).astype(mm_dtype)
        in_arrays.append(G)
        in_specs.append(pl.BlockSpec((P, L), lambda i: (0, 0)))
    in_arrays.append(idx2d)
    in_specs.append(pl.BlockSpec((tr, P), lambda i: (i, 0)))

    out_itemsize = jnp.dtype(out_dtype).itemsize
    idx_itemsize = jnp.dtype(idx_dtype).itemsize
    cost = pl.CostEstimate(
        flops=(2 * rows * P * L) if P > 1 else 0,
        transcendentals=0,
        bytes_accessed=rows * L * out_itemsize + rows * P * idx_itemsize,
    )

    # VMEM budget: double-buffered output + (lane-padded) index tiles + slack.
    vmem_need = 2 * (tr * L * out_itemsize + tr * 128 * idx_itemsize) + (2 << 20)
    vmem_limit = int(min(64 << 20, max(32 << 20, vmem_need)))

    out = pl.pallas_call(
        kernel,
        out_shape=jax.ShapeDtypeStruct((rows, L), out_dtype),
        grid=grid,
        in_specs=in_specs,
        out_specs=pl.BlockSpec((tr, L), lambda i: (i, 0)),
        compiler_params=pltpu.CompilerParams(
            # TODO(synk): verify on v7x that this single "parallel" axis shards
            # across both TensorCores; if not, add an explicit CORE_PARALLEL split.
            dimension_semantics=("parallel",),
            vmem_limit_bytes=vmem_limit,
        ),
        cost_estimate=cost,
    )(*in_arrays)

    # (rows, P*E) -> (rows*P, E) is a row-major byte-identical (free) reshape.
    out = out.reshape(rows * P, E)
    if pad:
        # Only when xs.size % P != 0: this slice is an extra full-size copy.
        out = out[:n]
    return out.reshape(*orig_shape, E)


if __name__ == "__main__":
    num_embeddings = 32
    key = jax.random.PRNGKey(0)

    # The module's frozen parameter: an identity matrix.
    weights = jnp.eye(num_embeddings, dtype=jnp.float32)

    # Small integer index tensor (batch of token grids): 2*8*8 = 128 indices.
    xs = jax.random.randint(key, (2, 8, 8), 0, num_embeddings, dtype=jnp.int32)

    out = jax.block_until_ready(one_hot_embedding(xs, weights))

    # Reference check against plain-JAX gather semantics (weights[xs]).
    ref = weights[xs]
    assert out.shape == xs.shape + (num_embeddings,), out.shape
    assert out.dtype == weights.dtype, out.dtype
    assert bool(jnp.all(out == ref)), "mismatch vs reference gather"

    print("KERNEL_OK")
</pallas_src>

<mosaic_0001>
module attributes {stable_mosaic.version = 11 : i64} {
  func.func @kernel(%arg0: i32, %arg1: memref<1x128xf32, #tpu.memory_space<vmem>>, %arg2: memref<4x128xbf16, #tpu.memory_space<vmem>>, %arg3: memref<32x4xi8, #tpu.memory_space<vmem>>, %arg4: memref<32x128xf32, #tpu.memory_space<vmem>>) attributes {dimension_semantics = [#tpu.dimension_semantics<parallel>], iteration_bounds = array<i64: 1>, scalar_prefetch = 0 : i64, scratch_operands = 0 : i64, tpu.core_type = #tpu.core_type<tc>, window_params = [{pipeline_mode = #tpu.pipeline_mode<synchronous>, transform_indices = @transform_0, window_bounds = array<i64: 1, 128>}, {pipeline_mode = #tpu.pipeline_mode<synchronous>, transform_indices = @transform_1, window_bounds = array<i64: 4, 128>}, {transform_indices = @transform_2, window_bounds = array<i64: 32, 4>}, {transform_indices = @transform_3, window_bounds = array<i64: 32, 128>}]} {
    %c0 = arith.constant 0 : index
    %c0_0 = arith.constant 0 : index
    %0 = vector.load %arg3[%c0, %c0_0] : memref<32x4xi8, #tpu.memory_space<vmem>>, vector<32x4xi8>
    %1 = arith.sitofp %0 : vector<32x4xi8> to vector<32x4xbf16>
    %c0_1 = arith.constant 0 : index
    %c0_2 = arith.constant 0 : index
    %2 = vector.load %arg2[%c0_1, %c0_2] : memref<4x128xbf16, #tpu.memory_space<vmem>>, vector<4x128xbf16>
    %cst = arith.constant dense<0.000000e+00> : vector<32x128xf32>
    %3 = tpu.matmul %1, %2, %cst {dimension_numbers = #tpu.dot_dimension_numbers<[1], [0], [0], [1], [0, 0, 1, 1], [], []>} : vector<32x4xbf16>, vector<4x128xbf16>, vector<32x128xf32> -> vector<32x128xf32>
    %c0_3 = arith.constant 0 : index
    %c0_4 = arith.constant 0 : index
    %4 = vector.load %arg1[%c0_3, %c0_4] : memref<1x128xf32, #tpu.memory_space<vmem>>, vector<1x128xf32>
    %5 = vector.broadcast %4 : vector<1x128xf32> to vector<32x128xf32>
    %6 = arith.cmpf oeq, %5, %3 : vector<32x128xf32>
    %7 = arith.extui %6 : vector<32x128xi1> to vector<32x128xi32>
    %8 = arith.sitofp %7 : vector<32x128xi32> to vector<32x128xf32>
    %c0_5 = arith.constant 0 : index
    %c0_6 = arith.constant 0 : index
    %9 = vector.load %arg4[%c0_5, %c0_6] : memref<32x128xf32, #tpu.memory_space<vmem>>, vector<32x128xf32>
    tpu.vector_store %arg4[%c0_5, %c0_6], %8 {strides = array<i32>} : memref<32x128xf32, #tpu.memory_space<vmem>>, vector<32x128xf32>,
    return
  }
  func.func @transform_0(%arg0: i32) -> (i32, i32) {
    %c0_i32 = arith.constant 0 : i32
    %c0_i32_0 = arith.constant 0 : i32
    %c0_i32_1 = arith.constant 0 : i32
    return %c0_i32, %c0_i32_0 : i32, i32
  }
  func.func @transform_1(%arg0: i32) -> (i32, i32) {
    %c0_i32 = arith.constant 0 : i32
    %c0_i32_0 = arith.constant 0 : i32
    %c0_i32_1 = arith.constant 0 : i32
    return %c0_i32, %c0_i32_0 : i32, i32
  }
  func.func @transform_2(%arg0: i32) -> (i32, i32) {
    %c0_i32 = arith.constant 0 : i32
    %c0_i32_0 = arith.constant 0 : i32
    return %arg0, %c0_i32 : i32, i32
  }
  func.func @transform_3(%arg0: i32) -> (i32, i32) {
    %c0_i32 = arith.constant 0 : i32
    %c0_i32_0 = arith.constant 0 : i32
    return %arg0, %c0_i32 : i32, i32
  }
}

</mosaic_0001>

<llo_original>
// kernel: tpu_custom_call.1
$region0: #{tpu_custom_call.1}
  #allocation0 [shape = 'u32[]', space=smem, size = 0x4, offset = 0x4, fixed_abs, tag = 'smem constant byte address 0x4 - core index']
  #allocation1 [shape = 'u32[72,128]{1,0:T(1,128)}', space=vmem, size = 0x9000, scoped, tag = 'internal scratch']
  %s0 = inlined_call_operand.vmem [shape: f32[1,128], index: 0, kind: input, shape index: {}]
  %s1 = inlined_call_operand.vmem [shape: bf16[4,128], index: 1, kind: input, shape index: {}]
  %s2 = inlined_call_operand.vmem [shape: s8[32,4], index: 2, kind: input, shape index: {}]
  %s3 = inlined_call_operand.hbm [shape: f32[32,128], index: 3, kind: output, shape index: {}]
  %s4 = sld [smem:[#allocation0]]
  $region22: #{tpu_custom_call.1} parent=0
    _
  %s6 = ssub.s32 1, %s4
  %s7 = scalar_select 0, %s6, %s4
  $region1: #{tpu_custom_call.1} parent=0
    #allocation2 [shape = 'u8[16384]{0}', space=vmem, size = 0x4000, scoped, tag = 'output window, operand 0, single buffered']
    #allocation3 [shape = 's32[1]{0}', space=sflag, size = 0x4, scoped, tag = 'scoped memory for tpu_custom_call.1']
    %8 = vsyncpa [#allocation3], 0
    // Predicated region
    $region2: #{tpu_custom_call.1} parent=1 // pred_check
      _
    $region3: #{tpu_custom_call.1} parent=1 // pred_check_branch
      %10 = sbr.rel (0) target = $region5
    $region4: #{tpu_custom_call.1} parent=1 // pred_region
      _
    $region5: #{tpu_custom_call.1} parent=1 // pred_fallthru
      _
    // Predicated region
    $region6: #{tpu_custom_call.1} parent=1 // pred_check
      _
    $region7: #{tpu_custom_call.1} parent=1 // pred_check_branch
      %12 = sbr.rel (0) target = $region9
    $region8: #{tpu_custom_call.1} parent=1 // pred_region
      _
    $region9: #{tpu_custom_call.1} parent=1 // pred_fallthru
      _
    // Predicated region
    $region10: #{tpu_custom_call.1} parent=1 // pred_check
      _
    $region11: #{tpu_custom_call.1} parent=1 // pred_check_branch
      %14 = sbr.rel (0) target = $region13
    $region12: #{tpu_custom_call.1} parent=1 // pred_region
      _
    $region13: #{tpu_custom_call.1} parent=1 // pred_fallthru
      _
    %v16 = vld [vmem:[%s2] sm:$0x3]
    %v17 = vld [vmem:[%s2 + $0x2] sm:$0x3]
    %v18 = vld [vmem:[%s2 + $0x4] sm:$0x3]
    %v19 = vld [vmem:[%s2 + $0x6] sm:$0x3]
    %v20 = vunpack.c.0.s8 %v16
    %v21 = vunpack.c.0.s8 %v17
    %v22 = vunpack.c.0.s8 %v18
    %v23 = vunpack.c.0.s8 %v19
    %v24 = vcvt.s32.f32 %v20
    %v25 = vcvt.s32.f32 %v21
    %v26 = vcvt.s32.f32 %v22
    %v27 = vcvt.s32.f32 %v23
    %v28 = vpack.c.bf16 %v25, %v24
    %v29 = vpack.c.bf16 %v27, %v26
    %v30 = vld [vmem:[%s1] sm:$0x3]
    %vm31 = vcmask 31744
    %v33 = vsel %vm31, %v28, 0
    %v36 = vsel %vm31, %v29, 0
    %vm38 = vcmask 1041408
    %v40 = vsel %vm38, %v30, 0
    %42 = vmatpush.bf16.msra.mxu0 0
    %43 = vmatpush.bf16.msra.mxu0 0
    %44 = vmatpush.bf16.msra.mxu0 0
    %45 = vmatpush.bf16.msra.mxu0 0
    %46 = vmatpush.bf16.msra.mxu0 0
    %47 = vmatpush.bf16.msra.mxu0 0
    %48 = vmatpush.bf16.msra.mxu0 0
    %49 = vmatpush.bf16.msra.mxu0 %v40
    %50 = vmatmul.bf16.gmra.mxu0 %v33
    %v51 = vpop.f32.mrf.mxu0
    %v52 = vadd.f32 0.0, %v51
    %v53 = vpop.f32.mrf.mxu0
    %v54 = vadd.f32 0.0, %v53
    %55 = vmatmul.bf16.gmra.mxu0 %v36
    %v56 = vpop.f32.mrf.mxu0
    %v57 = vadd.f32 0.0, %v56
    %v58 = vpop.f32.mrf.mxu0
    %v59 = vadd.f32 0.0, %v58
    %60 = vdwg.mxu0
    %v61 = vld [vmem:[%s0] sm:$0x1]
    %v63 = vperm.slane %v61, 0
    %vm65 = vcmp.eq.f32.partialorder %v63, %v52
    %vm66 = vcmp.eq.f32.partialorder %v63, %v54
    %vm67 = vcmp.eq.f32.partialorder %v63, %v57
    %vm68 = vcmp.eq.f32.partialorder %v63, %v59
    %v69 = vsel %vm65, 1, 0
    %v70 = vsel %vm66, 1, 0
    %v71 = vsel %vm67, 1, 0
    %v72 = vsel %vm68, 1, 0
    %v73 = vcvt.s32.f32 %v69
    %v74 = vcvt.s32.f32 %v70
    %v75 = vcvt.s32.f32 %v71
    %v76 = vcvt.s32.f32 %v72
    %77 = vst [vmem:[#allocation2] sm:$0xff] %v73
    %78 = vst [vmem:[#allocation2 + $0x8] sm:$0xff] %v74
    %79 = vst [vmem:[#allocation2 + $0x10] sm:$0xff] %v75
    %80 = vst [vmem:[#allocation2 + $0x18] sm:$0xff] %v76
    // Predicated region
    $region14: #{tpu_custom_call.1} parent=1 // pred_check
      _
    $region15: #{tpu_custom_call.1} parent=1 // pred_check_branch
      %82 = sbr.rel (0) target = $region17
    $region16: #{tpu_custom_call.1} parent=1 // pred_region
      %84 = vsyncadd [#allocation3], 0
      %s85 = sshll.u32 [#allocation2], 4
      %s86 = int_to_ptr.vmem [resolvable:$true] %s85
      %s87 = sshll.u32 %s3, 4
      %s88 = int_to_ptr.hbm [resolvable:$true] %s87
      %93 = dma.vmem_to_hbm [thread:$0]  %s86, 512, %s88, [#allocation3], 128, 128, 8
    $region17: #{tpu_custom_call.1} parent=1 // pred_fallthru
      _
    // Predicated region
    $region18: #{tpu_custom_call.1} parent=1 // pred_check
      _
    $region19: #{tpu_custom_call.1} parent=1 // pred_check_branch
      %95 = sbr.rel (0) target = $region21
    $region20: #{tpu_custom_call.1} parent=1 // pred_region
      %97 = dma.done [#allocation3], 512
    $region21: #{tpu_custom_call.1} parent=1 // pred_fallthru
      _
    %98 = vsyncpa [#allocation3], 1

</llo_original>
